<compile_context>
chip_gen: v7x
topology: tpu7x:2x2x1
jax: 0.10.0
libtpu: 0.0.40
codegen_flags: <defaults>
</compile_context>

<pallas_src>
import jax
import jax.numpy as jnp
from jax.experimental import pallas as pl
from jax.experimental.pallas import tpu as pltpu


def _attention_kernel(h_ref, patt_ref, feats_ref, wh_ref, bh_ref, wa_ref, out_ref):
    # h_ref    : (BB, rnn)
    # patt_ref : (BB, att_size, att_hid)
    # feats_ref: (BB, att_size, rnn)
    # wh_ref   : (rnn, att_hid)   bh_ref: (1, att_hid)   wa_ref: (1, att_hid)
    # out_ref  : (BB, rnn)

    # h2att linear on the MXU for the whole batch block.
    att_h = jnp.dot(h_ref[...], wh_ref[...],
                    preferred_element_type=jnp.float32) + bh_ref[...]      # (BB, att_hid)

    # broadcast-add + tanh (EUP).
    dot = jnp.tanh(patt_ref[...] + att_h[:, None, :])                      # (BB, att_size, att_hid)

    # alpha_net as VPU multiply + lane reduce (avoids a degenerate N=1 MXU matmul).
    # b_alpha is a constant shift on every score -> softmax no-op -> dropped.
    scores = jnp.sum(dot * wa_ref[...], axis=-1)                           # (BB, att_size)

    # softmax over att_size (last / lane axis).
    m = jnp.max(scores, axis=-1, keepdims=True)                            # (BB, 1)
    e = jnp.exp(scores - m)                                                # (BB, att_size)
    s = jnp.sum(e, axis=-1, keepdims=True)                                 # (BB, 1)
    r = pl.reciprocal(s, approx=True)                                      # EUP slot
    r = r * (2.0 - s * r)                                                  # one Newton step -> f32 accurate
    w = e * r                                                              # (BB, att_size)

    # weighted sum of att_feats == bmm(weight.unsqueeze(1), att_feats).squeeze(1),
    # done as VPU multiply + sublane reduce (no M=1 batched matmul).
    att_res = jnp.sum(w[:, :, None] * feats_ref[...], axis=1)              # (BB, rnn)
    out_ref[...] = att_res.astype(out_ref.dtype)


def attention_forward(h, att_feats, p_att_feats, params, *,
                      rnn_size, att_hid_size, batch_block=8):
    """Pure-JAX wrapper: reshape glue, batch padding, and the pallas_call."""
    B = h.shape[0]
    att_size = att_feats.size // B // rnn_size
    att_feats = att_feats.reshape(B, att_size, rnn_size).astype(jnp.float32)
    p_att = p_att_feats.reshape(B, att_size, att_hid_size).astype(jnp.float32)
    h2 = h.reshape(B, rnn_size).astype(jnp.float32)

    W_h2att, b_h2att, w_alpha, _b_alpha = params       # b_alpha unused: softmax no-op
    b_h2att = b_h2att.reshape(1, att_hid_size)
    w_alpha_row = w_alpha.reshape(1, att_hid_size)

    # Block the batch dimension; pad B up to a multiple of the block size.
    BB = batch_block
    n_blocks = -(-B // BB)
    B_pad = n_blocks * BB
    if B_pad != B:
        pad = B_pad - B
        h2 = jnp.pad(h2, ((0, pad), (0, 0)))
        att_feats = jnp.pad(att_feats, ((0, pad), (0, 0), (0, 0)))
        p_att = jnp.pad(p_att, ((0, pad), (0, 0), (0, 0)))

    out = pl.pallas_call(
        _attention_kernel,
        out_shape=jax.ShapeDtypeStruct((B_pad, rnn_size), jnp.float32),
        grid=(n_blocks,),
        in_specs=[
            pl.BlockSpec((BB, rnn_size),                lambda b: (b, 0)),
            pl.BlockSpec((BB, att_size, att_hid_size),  lambda b: (b, 0, 0)),
            pl.BlockSpec((BB, att_size, rnn_size),      lambda b: (b, 0, 0)),
            pl.BlockSpec((rnn_size, att_hid_size),      lambda b: (0, 0)),
            pl.BlockSpec((1, att_hid_size),             lambda b: (0, 0)),
            pl.BlockSpec((1, att_hid_size),             lambda b: (0, 0)),
        ],
        out_specs=pl.BlockSpec((BB, rnn_size), lambda b: (b, 0)),
        compiler_params=pltpu.CompilerParams(
            dimension_semantics=("parallel",)),
    )(h2, p_att, att_feats, W_h2att, b_h2att, w_alpha_row)

    return out[:B]


def attention_reference(h, att_feats, p_att_feats, params, *, rnn_size, att_hid_size):
    """Plain-JAX reference mirroring the PyTorch forward exactly (incl. b_alpha)."""
    B = h.shape[0]
    att_size = att_feats.size // B // rnn_size
    W_h2att, b_h2att, w_alpha, b_alpha = params
    att = p_att_feats.reshape(-1, att_size, att_hid_size)
    att_h = h @ W_h2att + b_h2att                              # (B, att_hid)
    dot = jnp.tanh(att + att_h[:, None, :])                    # (B, att_size, att_hid)
    dot = dot.reshape(-1, att_hid_size) @ w_alpha.reshape(att_hid_size, 1) + b_alpha
    dot = dot.reshape(-1, att_size)
    weight = jax.nn.softmax(dot, axis=1)
    att_feats_ = att_feats.reshape(-1, att_size, rnn_size)
    return jnp.einsum('bs,bsr->br', weight, att_feats_)


def _run_check(B, rnn_size, att_hid_size, att_size):
    key = jax.random.PRNGKey(0)
    k1, k2, k3, k4, k5, k6, k7 = jax.random.split(key, 7)

    # deterministic parameter init (nn.Linear shapes, stored pre-transposed for x @ W)
    W_h2att = jax.random.normal(k1, (rnn_size, att_hid_size), jnp.float32) * 0.1
    b_h2att = jax.random.normal(k2, (att_hid_size,), jnp.float32) * 0.1
    w_alpha = jax.random.normal(k3, (att_hid_size,), jnp.float32) * 0.1
    b_alpha = jax.random.normal(k4, (1,), jnp.float32) * 0.1
    params = (W_h2att, b_h2att, w_alpha, b_alpha)

    h = jax.random.normal(k5, (B, rnn_size), jnp.float32)
    att_feats = jax.random.normal(k6, (B, att_size, rnn_size), jnp.float32)
    p_att_feats = jax.random.normal(k7, (B, att_size, att_hid_size), jnp.float32)

    out = attention_forward(h, att_feats, p_att_feats, params,
                            rnn_size=rnn_size, att_hid_size=att_hid_size)
    out = jax.block_until_ready(out)

    ref = attention_reference(h, att_feats, p_att_feats, params,
                              rnn_size=rnn_size, att_hid_size=att_hid_size)
    assert out.shape == (B, rnn_size)
    assert jnp.allclose(out, ref, atol=1e-4, rtol=1e-4), f"mismatch vs reference (B={B})"


if __name__ == "__main__":
    rnn_size = 32        # opt.rnn_size
    att_hid_size = 32    # opt.att_hid_size
    att_size = 16        # number of attention locations (e.g. 4x4 spatial grid)

    _run_check(2, rnn_size, att_hid_size, att_size)    # small batch (padded to one block)
    _run_check(20, rnn_size, att_hid_size, att_size)   # multi-block grid + ragged padding

    print("KERNEL_OK")
</pallas_src>

<mosaic_0001>
module attributes {stable_mosaic.version = 11 : i64} {
  func.func @_attention_kernel(%arg0: i32, %arg1: memref<8x32xf32, #tpu.memory_space<vmem>>, %arg2: memref<8x16x32xf32, #tpu.memory_space<vmem>>, %arg3: memref<8x16x32xf32, #tpu.memory_space<vmem>>, %arg4: memref<32x32xf32, #tpu.memory_space<vmem>>, %arg5: memref<1x32xf32, #tpu.memory_space<vmem>>, %arg6: memref<1x32xf32, #tpu.memory_space<vmem>>, %arg7: memref<8x32xf32, #tpu.memory_space<vmem>>) attributes {dimension_semantics = [#tpu.dimension_semantics<parallel>], iteration_bounds = array<i64: 1>, scalar_prefetch = 0 : i64, scratch_operands = 0 : i64, tpu.core_type = #tpu.core_type<tc>, window_params = [{transform_indices = @transform_0, window_bounds = array<i64: 8, 32>}, {transform_indices = @transform_1, window_bounds = array<i64: 8, 16, 32>}, {transform_indices = @transform_2, window_bounds = array<i64: 8, 16, 32>}, {pipeline_mode = #tpu.pipeline_mode<synchronous>, transform_indices = @transform_3, window_bounds = array<i64: 32, 32>}, {pipeline_mode = #tpu.pipeline_mode<synchronous>, transform_indices = @transform_4, window_bounds = array<i64: 1, 32>}, {pipeline_mode = #tpu.pipeline_mode<synchronous>, transform_indices = @transform_5, window_bounds = array<i64: 1, 32>}, {transform_indices = @transform_6, window_bounds = array<i64: 8, 32>}]} {
    %c0 = arith.constant 0 : index
    %c0_0 = arith.constant 0 : index
    %0 = vector.load %arg1[%c0, %c0_0] : memref<8x32xf32, #tpu.memory_space<vmem>>, vector<8x32xf32>
    %c0_1 = arith.constant 0 : index
    %c0_2 = arith.constant 0 : index
    %1 = vector.load %arg4[%c0_1, %c0_2] : memref<32x32xf32, #tpu.memory_space<vmem>>, vector<32x32xf32>
    %cst = arith.constant dense<0.000000e+00> : vector<8x32xf32>
    %2 = tpu.matmul %0, %1, %cst {dimension_numbers = #tpu.dot_dimension_numbers<[1], [0], [0], [1], [0, 0, 1, 1], [], []>} : vector<8x32xf32>, vector<32x32xf32>, vector<8x32xf32> -> vector<8x32xf32>
    %c0_3 = arith.constant 0 : index
    %c0_4 = arith.constant 0 : index
    %3 = vector.load %arg5[%c0_3, %c0_4] : memref<1x32xf32, #tpu.memory_space<vmem>>, vector<1x32xf32>
    %4 = vector.broadcast %3 : vector<1x32xf32> to vector<8x32xf32>
    %5 = arith.addf %2, %4 : vector<8x32xf32>
    %c0_5 = arith.constant 0 : index
    %c0_6 = arith.constant 0 : index
    %c0_7 = arith.constant 0 : index
    %6 = vector.load %arg2[%c0_5, %c0_6, %c0_7] : memref<8x16x32xf32, #tpu.memory_space<vmem>>, vector<8x16x32xf32>
    %7 = vector.shape_cast %5 : vector<8x32xf32> to vector<8x1x32xf32>
    %8 = vector.broadcast %7 : vector<8x1x32xf32> to vector<8x16x32xf32>
    %9 = arith.addf %6, %8 : vector<8x16x32xf32>
    %10 = math.tanh %9 : vector<8x16x32xf32>
    %c0_8 = arith.constant 0 : index
    %c0_9 = arith.constant 0 : index
    %11 = vector.load %arg6[%c0_8, %c0_9] : memref<1x32xf32, #tpu.memory_space<vmem>>, vector<1x32xf32>
    %12 = vector.shape_cast %11 : vector<1x32xf32> to vector<1x1x32xf32>
    %13 = vector.broadcast %12 : vector<1x1x32xf32> to vector<8x16x32xf32>
    %14 = arith.mulf %10, %13 : vector<8x16x32xf32>
    %cst_10 = arith.constant dense<0.000000e+00> : vector<8x16xf32>
    %15 = vector.multi_reduction <add>, %14, %cst_10 [2] : vector<8x16x32xf32> to vector<8x16xf32>
    %cst_11 = arith.constant dense<0xFF800000> : vector<8xf32>
    %16 = vector.multi_reduction <maximumf>, %15, %cst_11 [1] : vector<8x16xf32> to vector<8xf32>
    %17 = vector.shape_cast %16 : vector<8xf32> to vector<8x1xf32>
    %18 = vector.broadcast %17 : vector<8x1xf32> to vector<8x16xf32>
    %19 = arith.subf %15, %18 : vector<8x16xf32>
    %20 = math.exp %19 : vector<8x16xf32>
    %cst_12 = arith.constant dense<0.000000e+00> : vector<8xf32>
    %21 = vector.multi_reduction <add>, %20, %cst_12 [1] : vector<8x16xf32> to vector<8xf32>
    %22 = vector.shape_cast %21 : vector<8xf32> to vector<8x1xf32>
    %23 = tpu.reciprocal %22 {approx = true} : vector<8x1xf32> -> vector<8x1xf32>
    %24 = arith.mulf %22, %23 : vector<8x1xf32>
    %cst_13 = arith.constant 2.000000e+00 : f32
    %25 = vector.broadcast %cst_13 : f32 to vector<8x1xf32>
    %26 = arith.subf %25, %24 : vector<8x1xf32>
    %27 = arith.mulf %23, %26 : vector<8x1xf32>
    %28 = vector.broadcast %27 : vector<8x1xf32> to vector<8x16xf32>
    %29 = arith.mulf %20, %28 : vector<8x16xf32>
    %30 = vector.shape_cast %29 : vector<8x16xf32> to vector<8x16x1xf32>
    %c0_14 = arith.constant 0 : index
    %c0_15 = arith.constant 0 : index
    %c0_16 = arith.constant 0 : index
    %31 = vector.load %arg3[%c0_14, %c0_15, %c0_16] : memref<8x16x32xf32, #tpu.memory_space<vmem>>, vector<8x16x32xf32>
    %32 = vector.broadcast %30 : vector<8x16x1xf32> to vector<8x16x32xf32>
    %33 = arith.mulf %32, %31 : vector<8x16x32xf32>
    %cst_17 = arith.constant dense<0.000000e+00> : vector<8x32xf32>
    %34 = vector.multi_reduction <add>, %33, %cst_17 [1] : vector<8x16x32xf32> to vector<8x32xf32>
    %c0_18 = arith.constant 0 : index
    %c0_19 = arith.constant 0 : index
    %35 = vector.load %arg7[%c0_18, %c0_19] : memref<8x32xf32, #tpu.memory_space<vmem>>, vector<8x32xf32>
    tpu.vector_store %arg7[%c0_18, %c0_19], %34 {strides = array<i32>} : memref<8x32xf32, #tpu.memory_space<vmem>>, vector<8x32xf32>,
    return
  }
  func.func @transform_0(%arg0: i32) -> (i32, i32) {
    %c0_i32 = arith.constant 0 : i32
    %c0_i32_0 = arith.constant 0 : i32
    return %arg0, %c0_i32 : i32, i32
  }
  func.func @transform_1(%arg0: i32) -> (i32, i32, i32) {
    %c0_i32 = arith.constant 0 : i32
    %c0_i32_0 = arith.constant 0 : i32
    %c0_i32_1 = arith.constant 0 : i32
    return %arg0, %c0_i32, %c0_i32_0 : i32, i32, i32
  }
  func.func @transform_2(%arg0: i32) -> (i32, i32, i32) {
    %c0_i32 = arith.constant 0 : i32
    %c0_i32_0 = arith.constant 0 : i32
    %c0_i32_1 = arith.constant 0 : i32
    return %arg0, %c0_i32, %c0_i32_0 : i32, i32, i32
  }
  func.func @transform_3(%arg0: i32) -> (i32, i32) {
    %c0_i32 = arith.constant 0 : i32
    %c0_i32_0 = arith.constant 0 : i32
    %c0_i32_1 = arith.constant 0 : i32
    return %c0_i32, %c0_i32_0 : i32, i32
  }
  func.func @transform_4(%arg0: i32) -> (i32, i32) {
    %c0_i32 = arith.constant 0 : i32
    %c0_i32_0 = arith.constant 0 : i32
    %c0_i32_1 = arith.constant 0 : i32
    return %c0_i32, %c0_i32_0 : i32, i32
  }
  func.func @transform_5(%arg0: i32) -> (i32, i32) {
    %c0_i32 = arith.constant 0 : i32
    %c0_i32_0 = arith.constant 0 : i32
    %c0_i32_1 = arith.constant 0 : i32
    return %c0_i32, %c0_i32_0 : i32, i32
  }
  func.func @transform_6(%arg0: i32) -> (i32, i32) {
    %c0_i32 = arith.constant 0 : i32
    %c0_i32_0 = arith.constant 0 : i32
    return %arg0, %c0_i32 : i32, i32
  }
}

</mosaic_0001>

<llo_original>
// kernel: tpu_custom_call.1
$region0: #{tpu_custom_call.1}
  #allocation0 [shape = 'u32[]', space=smem, size = 0x4, offset = 0x4, fixed_abs, tag = 'smem constant byte address 0x4 - core index']
  #allocation1 [shape = 'u32[144,128]{1,0:T(1,128)}', space=vmem, size = 0x12000, scoped, tag = 'internal scratch']
  %s0 = inlined_call_operand.hbm [shape: f32[8,32], index: 0, kind: input, shape index: {}]
  %s1 = inlined_call_operand.hbm [shape: f32[8,16,32], index: 1, kind: input, shape index: {}]
  %s2 = inlined_call_operand.hbm [shape: f32[8,16,32], index: 2, kind: input, shape index: {}]
  %s3 = inlined_call_operand.hbm [shape: f32[32,32], index: 3, kind: input, shape index: {}]
  %s4 = inlined_call_operand.vmem [shape: f32[1,32], index: 4, kind: input, shape index: {}]
  %s5 = inlined_call_operand.vmem [shape: f32[1,32], index: 5, kind: input, shape index: {}]
  %s6 = inlined_call_operand.hbm [shape: f32[8,32], index: 6, kind: output, shape index: {}]
  %s7 = sld [smem:[#allocation0]]
  $region50: #{tpu_custom_call.1} parent=0
    _
  %s9 = ssub.s32 1, %s7
  %s10 = scalar_select 0, %s9, %s7
  $region1: #{tpu_custom_call.1} parent=0
    #allocation2 [shape = 'u8[4096]{0}', space=vmem, size = 0x1000, scoped, tag = 'input window, operand 0, single buffered']
    #allocation3 [shape = 's32[1]{0}', space=sflag, size = 0x4, scoped, tag = 'scoped memory for tpu_custom_call.1']
    #allocation4 [shape = 's32[1]{0}', space=sflag, size = 0x4, scoped, tag = 'scoped memory for tpu_custom_call.1']
    #allocation5 [shape = 'u8[65536]{0}', space=vmem, size = 0x10000, scoped, tag = 'input window, operand 1, single buffered']
    #allocation6 [shape = 's32[1]{0}', space=sflag, size = 0x4, scoped, tag = 'scoped memory for tpu_custom_call.1']
    #allocation7 [shape = 'u8[65536]{0}', space=vmem, size = 0x10000, scoped, tag = 'input window, operand 2, single buffered']
    #allocation8 [shape = 'u8[16384]{0}', space=vmem, size = 0x4000, scoped, tag = 'input window, operand 3, single buffered']
    #allocation9 [shape = 's32[1]{0}', space=sflag, size = 0x4, scoped, tag = 'scoped memory for tpu_custom_call.1']
    #allocation10 [shape = 'u8[4096]{0}', space=vmem, size = 0x1000, scoped, tag = 'output window, operand 0, single buffered']
    %11 = vsyncpa [#allocation3], 0
    %12 = vsyncpa [#allocation6], 0
    %13 = vsyncpa [#allocation9], 0
    %14 = vsyncpa [#allocation4], 0
    // Predicated region
    $region2: #{tpu_custom_call.1} parent=1 // pred_check
      _
    $region3: #{tpu_custom_call.1} parent=1 // pred_check_branch
      %16 = sbr.rel (0) target = $region5
    $region4: #{tpu_custom_call.1} parent=1 // pred_region
      %s18 = ssub.s32 128, 128
      %19 = vsyncadd [#allocation3], %s18
      %s21 = sshll.u32 [#allocation2], 4
      %s22 = int_to_ptr.vmem [resolvable:$true] %s21
      %24 = dma.hbm_to_vmem [thread:$0]  %s0, 128, %s22, [#allocation3]
    $region5: #{tpu_custom_call.1} parent=1 // pred_fallthru
      _
    // Predicated region
    $region6: #{tpu_custom_call.1} parent=1 // pred_check
      _
    $region7: #{tpu_custom_call.1} parent=1 // pred_check_branch
      %26 = sbr.rel (0) target = $region9
    $region8: #{tpu_custom_call.1} parent=1 // pred_region
      %s28 = ssub.s32 2048, 2048
      %29 = vsyncadd [#allocation6], %s28
      %s30 = sshll.u32 [#allocation5], 4
      %s31 = int_to_ptr.vmem [resolvable:$true] %s30
      %36 = dma.hbm_to_vmem [thread:$0]  %s1, 2048, %s31, [#allocation6], 128, 128, 8
    $region9: #{tpu_custom_call.1} parent=1 // pred_fallthru
      _
    // Predicated region
    $region10: #{tpu_custom_call.1} parent=1 // pred_check
      _
    $region11: #{tpu_custom_call.1} parent=1 // pred_check_branch
      %38 = sbr.rel (0) target = $region13
    $region12: #{tpu_custom_call.1} parent=1 // pred_region
      %s40 = ssub.s32 2048, 2048
      %41 = vsyncadd [#allocation6], %s40
      %s42 = sshll.u32 [#allocation7], 4
      %s43 = int_to_ptr.vmem [resolvable:$true] %s42
      %48 = dma.hbm_to_vmem [thread:$0]  %s2, 2048, %s43, [#allocation6], 128, 128, 8
    $region13: #{tpu_custom_call.1} parent=1 // pred_fallthru
      _
    // Predicated region
    $region14: #{tpu_custom_call.1} parent=1 // pred_check
      _
    $region15: #{tpu_custom_call.1} parent=1 // pred_check_branch
      %50 = sbr.rel (0) target = $region17
    $region16: #{tpu_custom_call.1} parent=1 // pred_region
      %s52 = ssub.s32 512, 512
      %53 = vsyncadd [#allocation9], %s52
      %s54 = sshll.u32 [#allocation8], 4
      %s55 = int_to_ptr.vmem [resolvable:$true] %s54
      %60 = dma.hbm_to_vmem [thread:$0]  %s3, 512, %s55, [#allocation9], 128, 128, 8
    $region17: #{tpu_custom_call.1} parent=1 // pred_fallthru
      _
    // Predicated region
    $region18: #{tpu_custom_call.1} parent=1 // pred_check
      _
    $region19: #{tpu_custom_call.1} parent=1 // pred_check_branch
      %62 = sbr.rel (0) target = $region21
    $region20: #{tpu_custom_call.1} parent=1 // pred_region
      _
    $region21: #{tpu_custom_call.1} parent=1 // pred_fallthru
      _
    // Predicated region
    $region22: #{tpu_custom_call.1} parent=1 // pred_check
      _
    $region23: #{tpu_custom_call.1} parent=1 // pred_check_branch
      %64 = sbr.rel (0) target = $region25
    $region24: #{tpu_custom_call.1} parent=1 // pred_region
      _
    $region25: #{tpu_custom_call.1} parent=1 // pred_fallthru
      _
    // Predicated region
    $region26: #{tpu_custom_call.1} parent=1 // pred_check
      _
    $region27: #{tpu_custom_call.1} parent=1 // pred_check_branch
      %66 = sbr.rel (0) target = $region29
    $region28: #{tpu_custom_call.1} parent=1 // pred_region
      %67 = dma.done [#allocation3], 128
    $region29: #{tpu_custom_call.1} parent=1 // pred_fallthru
      _
    // Predicated region
    $region30: #{tpu_custom_call.1} parent=1 // pred_check
      _
    $region31: #{tpu_custom_call.1} parent=1 // pred_check_branch
      %69 = sbr.rel (0) target = $region33
    $region32: #{tpu_custom_call.1} parent=1 // pred_region
      %70 = dma.done [#allocation6], 2048
    $region33: #{tpu_custom_call.1} parent=1 // pred_fallthru
      _
    // Predicated region
    $region34: #{tpu_custom_call.1} parent=1 // pred_check
      _
    $region35: #{tpu_custom_call.1} parent=1 // pred_check_branch
      %72 = sbr.rel (0) target = $region37
    $region36: #{tpu_custom_call.1} parent=1 // pred_region
      %73 = dma.done [#allocation6], 2048
    $region37: #{tpu_custom_call.1} parent=1 // pred_fallthru
      _
    // Predicated region
    $region38: #{tpu_custom_call.1} parent=1 // pred_check
      _
    $region39: #{tpu_custom_call.1} parent=1 // pred_check_branch
      %75 = sbr.rel (0) target = $region41
    $region40: #{tpu_custom_call.1} parent=1 // pred_region
      %76 = dma.done [#allocation9], 512
    $region41: #{tpu_custom_call.1} parent=1 // pred_fallthru
      _
    %v77 = vld [vmem:[#allocation2] sm:$0xff]
    %v78 = vld [vmem:[#allocation8] sm:$0xff]
    %v79 = vld [vmem:[#allocation8 + $0x8] sm:$0xff]
    %v80 = vld [vmem:[#allocation8 + $0x10] sm:$0xff]
    %v81 = vld [vmem:[#allocation8 + $0x18] sm:$0xff]
    %v82 = vld [vmem:[%s4] sm:$0x1]
    %v84 = vlaneseq
    %v85 = vshrl.u32 %v84, 7
    %v86 = vsub.s32 0, %v85
    %v87 = vrot.slane %v82, %v86
    %vm89 = vcmask 261120
    %v91 = vsel %vm89, %v77, 0
    %93 = vmatprep.subr.mxu0 0.0
    %94 = vmatpush1.msra.mxu0 %v78
    %95 = vmatprep.subr.mxu0 0.0
    %96 = vmatpush1.msra.mxu0 %v79
    %97 = vmatprep.subr.mxu0 0.0
    %98 = vmatpush1.msra.mxu0 %v80
    %99 = vmatprep.subr.mxu0 0.0
    %100 = vmatpush1.msra.mxu0 %v81
    %101 = vmatprep.subr.mxu0 0.0
    %102 = vmatpush1.msra.mxu0 0.0
    %103 = vmatprep.subr.mxu0 0.0
    %104 = vmatpush1.msra.mxu0 0.0
    %105 = vmatprep.subr.mxu0 0.0
    %106 = vmatpush1.msra.mxu0 0.0
    %107 = vmatprep.subr.mxu0 0.0
    %108 = vmatpush1.msra.mxu0 0.0
    %109 = vmatprep.subr.mxu0 0.0
    %110 = vmatpush1.msra.mxu0 0.0
    %111 = vmatprep.subr.mxu0 0.0
    %112 = vmatpush1.msra.mxu0 0.0
    %113 = vmatprep.subr.mxu0 0.0
    %114 = vmatpush1.msra.mxu0 0.0
    %115 = vmatprep.subr.mxu0 0.0
    %116 = vmatpush1.msra.mxu0 0.0
    %117 = vmatprep.subr.mxu0 0.0
    %118 = vmatpush1.msra.mxu0 0.0
    %119 = vmatprep.subr.mxu0 0.0
    %120 = vmatpush1.msra.mxu0 0.0
    %121 = vmatprep.subr.mxu0 0.0
    %122 = vmatpush1.msra.mxu0 0.0
    %123 = vmatprep.subr.mxu0 0.0
    %124 = vmatpush1.msra.mxu0 0.0
    %125 = vmatprep.subr.mxu0 0.0
    %126 = vmatpush1.msra.mxu0 0.0
    %127 = vmatprep.subr.mxu0 0.0
    %128 = vmatpush1.msra.mxu0 0.0
    %129 = vmatprep.subr.mxu0 0.0
    %130 = vmatpush1.msra.mxu0 0.0
    %131 = vmatprep.subr.mxu0 0.0
    %132 = vmatpush1.msra.mxu0 0.0
    %133 = vmatprep.subr.mxu0 0.0
    %134 = vmatpush1.msra.mxu0 0.0
    %135 = vmatprep.subr.mxu0 0.0
    %136 = vmatpush1.msra.mxu0 0.0
    %137 = vmatprep.subr.mxu0 0.0
    %138 = vmatpush1.msra.mxu0 0.0
    %139 = vmatprep.subr.mxu0 0.0
    %140 = vmatpush1.msra.mxu0 0.0
    %141 = vmatprep.subr.mxu0 0.0
    %142 = vmatpush1.msra.mxu0 0.0
    %143 = vmatprep.subr.mxu0 0.0
    %144 = vmatpush1.msra.mxu0 0.0
    %145 = vmatprep.subr.mxu0 0.0
    %146 = vmatpush1.msra.mxu0 0.0
    %147 = vmatprep.subr.mxu0 0.0
    %148 = vmatpush1.msra.mxu0 0.0
    %149 = vmatprep.subr.mxu0 0.0
    %150 = vmatpush1.msra.mxu0 0.0
    %151 = vmatprep.subr.mxu0 0.0
    %152 = vmatpush1.msra.mxu0 0.0
    %153 = vmatprep.subr.mxu0 0.0
    %154 = vmatpush1.msra.mxu0 0.0
    %155 = vmatprep.subr.mxu0 0.0
    %156 = vmatpush1.msra.mxu0 0.0
    %157 = vmatprep.mubr.f32.mxu0 0.0
    %158 = vmatmul.mubr.f32.gmra.mrb[0].mxu0 %v91
    %v159 = vpop.f32.mrb[0].mxu0
    %v160 = vadd.f32 %v87, %v159
    %v161 = vpop.f32.mrb[0].mxu0
    %162 = vdwg.mxu0
    %v163 = vld [vmem:[#allocation5] sm:$0xff]
    %v164 = vld [vmem:[#allocation5 + $0x8] sm:$0xff]
    %v165 = vld [vmem:[#allocation5 + $0x10] sm:$0xff]
    %v166 = vld [vmem:[#allocation5 + $0x18] sm:$0xff]
    %v167 = vld [vmem:[#allocation5 + $0x20] sm:$0xff]
    %v168 = vld [vmem:[#allocation5 + $0x28] sm:$0xff]
    %v169 = vld [vmem:[#allocation5 + $0x30] sm:$0xff]
    %v170 = vld [vmem:[#allocation5 + $0x38] sm:$0xff]
    %v171 = vld [vmem:[#allocation5 + $0x40] sm:$0xff]
    %v172 = vld [vmem:[#allocation5 + $0x48] sm:$0xff]
    %v173 = vld [vmem:[#allocation5 + $0x50] sm:$0xff]
    %v174 = vld [vmem:[#allocation5 + $0x58] sm:$0xff]
    %v175 = vld [vmem:[#allocation5 + $0x60] sm:$0xff]
    %v176 = vld [vmem:[#allocation5 + $0x68] sm:$0xff]
    %v177 = vld [vmem:[#allocation5 + $0x70] sm:$0xff]
    %v178 = vld [vmem:[#allocation5 + $0x78] sm:$0xff]
    %v180 = vcombine.high %v160, %v160
    %v182 = vunpack.c.l.s4 1966171168
    %v183 = vunpack.c.0.s8 %v182
    %v184 = vlaneseq
    %v185 = vshrl.u32 %v184, 7
    %v186 = vsub.s32 %v183, %v185
    %v187 = vrot.slane %v160, %v186
    %v189 = vunpack.c.l.s4 1966171168
    %v190 = vunpack.c.0.s8 %v189
    %v191 = vlaneseq
    %v192 = vshrl.u32 %v191, 7
    %v193 = vsub.s32 %v190, %v192
    %v194 = vrot.slane %v180, %v193
    %v195 = vcombine.high %v187, %v187
    %v196 = vcombine.high %v194, %v194
    %v198 = vunpack.c.l.s4 1966171168
    %v199 = vunpack.c.0.s8 %v198
    %v200 = vlaneseq
    %v201 = vshrl.u32 %v200, 7
    %v202 = vsub.s32 %v199, %v201
    %v203 = vrot.slane %v187, %v202
    %v205 = vunpack.c.l.s4 1966171168
    %v206 = vunpack.c.0.s8 %v205
    %v207 = vlaneseq
    %v208 = vshrl.u32 %v207, 7
    %v209 = vsub.s32 %v206, %v208
    %v210 = vrot.slane %v194, %v209
    %v212 = vunpack.c.l.s4 1966171168
    %v213 = vunpack.c.0.s8 %v212
    %v214 = vlaneseq
    %v215 = vshrl.u32 %v214, 7
    %v216 = vsub.s32 %v213, %v215
    %v217 = vrot.slane %v195, %v216
    %v219 = vunpack.c.l.s4 1966171168
    %v220 = vunpack.c.0.s8 %v219
    %v221 = vlaneseq
    %v222 = vshrl.u32 %v221, 7
    %v223 = vsub.s32 %v220, %v222
    %v224 = vrot.slane %v196, %v223
    %v225 = vcombine.high %v203, %v203
    %v226 = vcombine.high %v210, %v210
    %v227 = vcombine.high %v217, %v217
    %v228 = vcombine.high %v224, %v224
    %v229 = vlaneseq
    %v230 = vshrl.u32 %v229, 7
    %v231 = vsub.s32 0, %v230
    %v232 = vrot.slane %v203, %v231
    %v233 = vlaneseq
    %v234 = vshrl.u32 %v233, 7
    %v235 = vsub.s32 0, %v234
    %v236 = vrot.slane %v217, %v235
    %v237 = vlaneseq
    %v238 = vshrl.u32 %v237, 7
    %v239 = vsub.s32 0, %v238
    %v240 = vrot.slane %v225, %v239
    %v241 = vlaneseq
    %v242 = vshrl.u32 %v241, 7
    %v243 = vsub.s32 0, %v242
    %v244 = vrot.slane %v227, %v243
    %v245 = vlaneseq
    %v246 = vshrl.u32 %v245, 7
    %v247 = vsub.s32 0, %v246
    %v248 = vrot.slane %v210, %v247
    %v249 = vlaneseq
    %v250 = vshrl.u32 %v249, 7
    %v251 = vsub.s32 0, %v250
    %v252 = vrot.slane %v224, %v251
    %v253 = vlaneseq
    %v254 = vshrl.u32 %v253, 7
    %v255 = vsub.s32 0, %v254
    %v256 = vrot.slane %v226, %v255
    %v257 = vlaneseq
    %v258 = vshrl.u32 %v257, 7
    %v259 = vsub.s32 0, %v258
    %v260 = vrot.slane %v228, %v259
    %v269 = vadd.f32 %v163, %v232
    %v270 = vadd.f32 %v164, %v232
    %v271 = vadd.f32 %v165, %v236
    %v272 = vadd.f32 %v166, %v236
    %v273 = vadd.f32 %v167, %v240
    %v274 = vadd.f32 %v168, %v240
    %v275 = vadd.f32 %v169, %v244
    %v276 = vadd.f32 %v170, %v244
    %v277 = vadd.f32 %v171, %v248
    %v278 = vadd.f32 %v172, %v248
    %v279 = vadd.f32 %v173, %v252
    %v280 = vadd.f32 %v174, %v252
    %v281 = vadd.f32 %v175, %v256
    %v282 = vadd.f32 %v176, %v256
    %v283 = vadd.f32 %v177, %v260
    %v284 = vadd.f32 %v178, %v260
    %v285 = vtanh.pop %v269
    %v286 = vtanh.pop %v270
    %v287 = vtanh.pop %v271
    %v288 = vtanh.pop %v272
    %v289 = vtanh.pop %v273
    %v290 = vtanh.pop %v274
    %v291 = vtanh.pop %v275
    %v292 = vtanh.pop %v276
    %v293 = vtanh.pop %v277
    %v294 = vtanh.pop %v278
    %v295 = vtanh.pop %v279
    %v296 = vtanh.pop %v280
    %v297 = vtanh.pop %v281
    %v298 = vtanh.pop %v282
    %v299 = vtanh.pop %v283
    %v300 = vtanh.pop %v284
    %v301 = vld [vmem:[%s5] sm:$0x1]
    %v303 = vlaneseq
    %v304 = vshrl.u32 %v303, 7
    %v305 = vsub.s32 0, %v304
    %v306 = vrot.slane %v301, %v305
    %v308 = vmul.f32 %v285, %v306
    %v309 = vmul.f32 %v286, %v306
    %v310 = vmul.f32 %v287, %v306
    %v311 = vmul.f32 %v288, %v306
    %v312 = vmul.f32 %v289, %v306
    %v313 = vmul.f32 %v290, %v306
    %v314 = vmul.f32 %v291, %v306
    %v315 = vmul.f32 %v292, %v306
    %v316 = vmul.f32 %v293, %v306
    %v317 = vmul.f32 %v294, %v306
    %v318 = vmul.f32 %v295, %v306
    %v319 = vmul.f32 %v296, %v306
    %v320 = vmul.f32 %v297, %v306
    %v321 = vmul.f32 %v298, %v306
    %v322 = vmul.f32 %v299, %v306
    %v323 = vmul.f32 %v300, %v306
    %v324 = vsel %vm89, %v308, 0.0
    %325 = vadd.xlane.f32.xlu0 %v324
    %v326 = vpop.xlane.xlu0 %325
    %v327 = vsel %vm89, %v309, 0.0
    %328 = vadd.xlane.f32.xlu0 %v327
    %v329 = vpop.xlane.xlu0 %328
    %v330 = vsel %vm89, %v310, 0.0
    %331 = vadd.xlane.f32.xlu0 %v330
    %v332 = vpop.xlane.xlu0 %331
    %v333 = vsel %vm89, %v311, 0.0
    %334 = vadd.xlane.f32.xlu0 %v333
    %v335 = vpop.xlane.xlu0 %334
    %v336 = vsel %vm89, %v312, 0.0
    %337 = vadd.xlane.f32.xlu0 %v336
    %v338 = vpop.xlane.xlu0 %337
    %v339 = vsel %vm89, %v313, 0.0
    %340 = vadd.xlane.f32.xlu0 %v339
    %v341 = vpop.xlane.xlu0 %340
    %v342 = vsel %vm89, %v314, 0.0
    %343 = vadd.xlane.f32.xlu0 %v342
    %v344 = vpop.xlane.xlu0 %343
    %v345 = vsel %vm89, %v315, 0.0
    %346 = vadd.xlane.f32.xlu0 %v345
    %v347 = vpop.xlane.xlu0 %346
    %v348 = vsel %vm89, %v316, 0.0
    %349 = vadd.xlane.f32.xlu0 %v348
    %v350 = vpop.xlane.xlu0 %349
    %v351 = vsel %vm89, %v317, 0.0
    %352 = vadd.xlane.f32.xlu0 %v351
    %v353 = vpop.xlane.xlu0 %352
    %v354 = vsel %vm89, %v318, 0.0
    %355 = vadd.xlane.f32.xlu0 %v354
    %v356 = vpop.xlane.xlu0 %355
    %v357 = vsel %vm89, %v319, 0.0
    %358 = vadd.xlane.f32.xlu0 %v357
    %v359 = vpop.xlane.xlu0 %358
    %v360 = vsel %vm89, %v320, 0.0
    %361 = vadd.xlane.f32.xlu0 %v360
    %v362 = vpop.xlane.xlu0 %361
    %v363 = vsel %vm89, %v321, 0.0
    %364 = vadd.xlane.f32.xlu0 %v363
    %v365 = vpop.xlane.xlu0 %364
    %v366 = vsel %vm89, %v322, 0.0
    %367 = vadd.xlane.f32.xlu0 %v366
    %v368 = vpop.xlane.xlu0 %367
    %v369 = vsel %vm89, %v323, 0.0
    %370 = vadd.xlane.f32.xlu0 %v369
    %v371 = vpop.xlane.xlu0 %370
    %v388 = vlaneseq
    %v389 = vand.u32 %v388, 127
    %v390 = vlaneseq
    %v391 = vshrl.u32 %v390, 7
    %v392 = vsub.s32 %v389, %v391
    %v393 = vrot.slane %v326, %v392
    %v394 = vadd.s32 %v389, 4294967288
    %v395 = vlaneseq
    %v396 = vshrl.u32 %v395, 7
    %v397 = vsub.s32 %v394, %v396
    %v398 = vrot.slane %v329, %v397
    %vm399 = vcmask 130112
    %v400 = vsel %vm399, %v398, %v393
    %v401 = vlaneseq
    %v402 = vshrl.u32 %v401, 7
    %v403 = vsub.s32 %v389, %v402
    %v404 = vrot.slane %v332, %v403
    %v405 = vlaneseq
    %v406 = vshrl.u32 %v405, 7
    %v407 = vsub.s32 %v394, %v406
    %v408 = vrot.slane %v335, %v407
    %v409 = vsel %vm399, %v408, %v404
    %v410 = vlaneseq
    %v411 = vshrl.u32 %v410, 7
    %v412 = vsub.s32 %v389, %v411
    %v413 = vrot.slane %v338, %v412
    %v414 = vlaneseq
    %v415 = vshrl.u32 %v414, 7
    %v416 = vsub.s32 %v394, %v415
    %v417 = vrot.slane %v341, %v416
    %v418 = vsel %vm399, %v417, %v413
    %v419 = vlaneseq
    %v420 = vshrl.u32 %v419, 7
    %v421 = vsub.s32 %v389, %v420
    %v422 = vrot.slane %v344, %v421
    %v423 = vlaneseq
    %v424 = vshrl.u32 %v423, 7
    %v425 = vsub.s32 %v394, %v424
    %v426 = vrot.slane %v347, %v425
    %v427 = vsel %vm399, %v426, %v422
    %v428 = vlaneseq
    %v429 = vshrl.u32 %v428, 7
    %v430 = vsub.s32 %v389, %v429
    %v431 = vrot.slane %v350, %v430
    %v432 = vlaneseq
    %v433 = vshrl.u32 %v432, 7
    %v434 = vsub.s32 %v394, %v433
    %v435 = vrot.slane %v353, %v434
    %v436 = vsel %vm399, %v435, %v431
    %v437 = vlaneseq
    %v438 = vshrl.u32 %v437, 7
    %v439 = vsub.s32 %v389, %v438
    %v440 = vrot.slane %v356, %v439
    %v441 = vlaneseq
    %v442 = vshrl.u32 %v441, 7
    %v443 = vsub.s32 %v394, %v442
    %v444 = vrot.slane %v359, %v443
    %v445 = vsel %vm399, %v444, %v440
    %v446 = vlaneseq
    %v447 = vshrl.u32 %v446, 7
    %v448 = vsub.s32 %v389, %v447
    %v449 = vrot.slane %v362, %v448
    %v450 = vlaneseq
    %v451 = vshrl.u32 %v450, 7
    %v452 = vsub.s32 %v394, %v451
    %v453 = vrot.slane %v365, %v452
    %v454 = vsel %vm399, %v453, %v449
    %v455 = vlaneseq
    %v456 = vshrl.u32 %v455, 7
    %v457 = vsub.s32 %v389, %v456
    %v458 = vrot.slane %v368, %v457
    %v459 = vlaneseq
    %v460 = vshrl.u32 %v459, 7
    %v461 = vsub.s32 %v394, %v460
    %v462 = vrot.slane %v371, %v461
    %v463 = vsel %vm399, %v462, %v458
    %vm464 = vcmask 1041409
    %v465 = vsel %vm464, %v409, %v400
    %vm466 = vcmask 1042434
    %v467 = vsel %vm466, %v418, %v465
    %vm468 = vcmask 1043459
    %v469 = vsel %vm468, %v427, %v467
    %vm470 = vcmask 1044484
    %v471 = vsel %vm470, %v436, %v469
    %vm472 = vcmask 1045509
    %v473 = vsel %vm472, %v445, %v471
    %vm474 = vcmask 1046534
    %v475 = vsel %vm474, %v454, %v473
    %vm476 = vcmask 1047559
    %v477 = vsel %vm476, %v463, %v475
    %vm479 = vcmask 130048
    %v480 = vsel %vm479, %v477, -inf
    %481 = vmax.xlane.f32.xlu0 %v480
    %v482 = vpop.xlane.xlu0 %481
    %v484 = vlaneseq
    %v485 = vshrl.u32 %v484, 7
    %v486 = vsub.s32 0, %v485
    %v487 = vrot.slane %v482, %v486
    %v488 = vlaneseq
    %v489 = vshrl.u32 %v488, 7
    %v490 = vsub.s32 1, %v489
    %v491 = vrot.slane %v482, %v490
    %v492 = vlaneseq
    %v493 = vshrl.u32 %v492, 7
    %v494 = vsub.s32 2, %v493
    %v495 = vrot.slane %v482, %v494
    %v496 = vlaneseq
    %v497 = vshrl.u32 %v496, 7
    %v498 = vsub.s32 3, %v497
    %v499 = vrot.slane %v482, %v498
    %v500 = vlaneseq
    %v501 = vshrl.u32 %v500, 7
    %v502 = vsub.s32 4, %v501
    %v503 = vrot.slane %v482, %v502
    %v504 = vlaneseq
    %v505 = vshrl.u32 %v504, 7
    %v506 = vsub.s32 5, %v505
    %v507 = vrot.slane %v482, %v506
    %v508 = vlaneseq
    %v509 = vshrl.u32 %v508, 7
    %v510 = vsub.s32 6, %v509
    %v511 = vrot.slane %v482, %v510
    %v512 = vlaneseq
    %v513 = vshrl.u32 %v512, 7
    %v514 = vsub.s32 7, %v513
    %v515 = vrot.slane %v482, %v514
    %v524 = vsub.f32 %v326, %v487
    %v525 = vsub.f32 %v329, %v487
    %v526 = vsub.f32 %v332, %v491
    %v527 = vsub.f32 %v335, %v491
    %v528 = vsub.f32 %v338, %v495
    %v529 = vsub.f32 %v341, %v495
    %v530 = vsub.f32 %v344, %v499
    %v531 = vsub.f32 %v347, %v499
    %v532 = vsub.f32 %v350, %v503
    %v533 = vsub.f32 %v353, %v503
    %v534 = vsub.f32 %v356, %v507
    %v535 = vsub.f32 %v359, %v507
    %v536 = vsub.f32 %v362, %v511
    %v537 = vsub.f32 %v365, %v511
    %v538 = vsub.f32 %v368, %v515
    %v539 = vsub.f32 %v371, %v515
    %v540 = vmul.f32 %v524, 1.442695
    %v541 = vpow.pop %v540
    %v542 = vmul.f32 %v525, 1.442695
    %v543 = vpow.pop %v542
    %v544 = vmul.f32 %v526, 1.442695
    %v545 = vpow.pop %v544
    %v546 = vmul.f32 %v527, 1.442695
    %v547 = vpow.pop %v546
    %v548 = vmul.f32 %v528, 1.442695
    %v549 = vpow.pop %v548
    %v550 = vmul.f32 %v529, 1.442695
    %v551 = vpow.pop %v550
    %v552 = vmul.f32 %v530, 1.442695
    %v553 = vpow.pop %v552
    %v554 = vmul.f32 %v531, 1.442695
    %v555 = vpow.pop %v554
    %v556 = vmul.f32 %v532, 1.442695
    %v557 = vpow.pop %v556
    %v558 = vmul.f32 %v533, 1.442695
    %v559 = vpow.pop %v558
    %v560 = vmul.f32 %v534, 1.442695
    %v561 = vpow.pop %v560
    %v562 = vmul.f32 %v535, 1.442695
    %v563 = vpow.pop %v562
    %v564 = vmul.f32 %v536, 1.442695
    %v565 = vpow.pop %v564
    %v566 = vmul.f32 %v537, 1.442695
    %v567 = vpow.pop %v566
    %v568 = vmul.f32 %v538, 1.442695
    %v569 = vpow.pop %v568
    %v570 = vmul.f32 %v539, 1.442695
    %v571 = vpow.pop %v570
    %588 = vset.pattern.permute.xlu0 0
    %589 = vperm.xlu0 %588, %v541
    %v590 = vpop.permute.xlu0 %589
    %591 = vset.pattern.permute.xlu0 0
    %592 = vperm.xlu0 %591, %v543
    %v593 = vpop.permute.xlu0 %592
    %594 = vset.pattern.permute.xlu0 0
    %595 = vperm.xlu0 %594, %v545
    %v596 = vpop.permute.xlu0 %595
    %597 = vset.pattern.permute.xlu0 0
    %598 = vperm.xlu0 %597, %v547
    %v599 = vpop.permute.xlu0 %598
    %600 = vset.pattern.permute.xlu0 0
    %601 = vperm.xlu0 %600, %v549
    %v602 = vpop.permute.xlu0 %601
    %603 = vset.pattern.permute.xlu0 0
    %604 = vperm.xlu0 %603, %v551
    %v605 = vpop.permute.xlu0 %604
    %606 = vset.pattern.permute.xlu0 0
    %607 = vperm.xlu0 %606, %v553
    %v608 = vpop.permute.xlu0 %607
    %609 = vset.pattern.permute.xlu0 0
    %610 = vperm.xlu0 %609, %v555
    %v611 = vpop.permute.xlu0 %610
    %612 = vset.pattern.permute.xlu0 0
    %613 = vperm.xlu0 %612, %v557
    %v614 = vpop.permute.xlu0 %613
    %615 = vset.pattern.permute.xlu0 0
    %616 = vperm.xlu0 %615, %v559
    %v617 = vpop.permute.xlu0 %616
    %618 = vset.pattern.permute.xlu0 0
    %619 = vperm.xlu0 %618, %v561
    %v620 = vpop.permute.xlu0 %619
    %621 = vset.pattern.permute.xlu0 0
    %622 = vperm.xlu0 %621, %v563
    %v623 = vpop.permute.xlu0 %622
    %624 = vset.pattern.permute.xlu0 0
    %625 = vperm.xlu0 %624, %v565
    %v626 = vpop.permute.xlu0 %625
    %627 = vset.pattern.permute.xlu0 0
    %628 = vperm.xlu0 %627, %v567
    %v629 = vpop.permute.xlu0 %628
    %630 = vset.pattern.permute.xlu0 0
    %631 = vperm.xlu0 %630, %v569
    %v632 = vpop.permute.xlu0 %631
    %633 = vset.pattern.permute.xlu0 0
    %634 = vperm.xlu0 %633, %v571
    %v635 = vpop.permute.xlu0 %634
    %v636 = vlaneseq
    %v637 = vshrl.u32 %v636, 7
    %v638 = vsub.s32 %v389, %v637
    %v639 = vrot.slane %v590, %v638
    %v640 = vlaneseq
    %v641 = vshrl.u32 %v640, 7
    %v642 = vsub.s32 %v394, %v641
    %v643 = vrot.slane %v593, %v642
    %v644 = vsel %vm399, %v643, %v639
    %v645 = vlaneseq
    %v646 = vshrl.u32 %v645, 7
    %v647 = vsub.s32 %v389, %v646
    %v648 = vrot.slane %v596, %v647
    %v649 = vlaneseq
    %v650 = vshrl.u32 %v649, 7
    %v651 = vsub.s32 %v394, %v650
    %v652 = vrot.slane %v599, %v651
    %v653 = vsel %vm399, %v652, %v648
    %v654 = vlaneseq
    %v655 = vshrl.u32 %v654, 7
    %v656 = vsub.s32 %v389, %v655
    %v657 = vrot.slane %v602, %v656
    %v658 = vlaneseq
    %v659 = vshrl.u32 %v658, 7
    %v660 = vsub.s32 %v394, %v659
    %v661 = vrot.slane %v605, %v660
    %v662 = vsel %vm399, %v661, %v657
    %v663 = vlaneseq
    %v664 = vshrl.u32 %v663, 7
    %v665 = vsub.s32 %v389, %v664
    %v666 = vrot.slane %v608, %v665
    %v667 = vlaneseq
    %v668 = vshrl.u32 %v667, 7
    %v669 = vsub.s32 %v394, %v668
    %v670 = vrot.slane %v611, %v669
    %v671 = vsel %vm399, %v670, %v666
    %v672 = vlaneseq
    %v673 = vshrl.u32 %v672, 7
    %v674 = vsub.s32 %v389, %v673
    %v675 = vrot.slane %v614, %v674
    %v676 = vlaneseq
    %v677 = vshrl.u32 %v676, 7
    %v678 = vsub.s32 %v394, %v677
    %v679 = vrot.slane %v617, %v678
    %v680 = vsel %vm399, %v679, %v675
    %v681 = vlaneseq
    %v682 = vshrl.u32 %v681, 7
    %v683 = vsub.s32 %v389, %v682
    %v684 = vrot.slane %v620, %v683
    %v685 = vlaneseq
    %v686 = vshrl.u32 %v685, 7
    %v687 = vsub.s32 %v394, %v686
    %v688 = vrot.slane %v623, %v687
    %v689 = vsel %vm399, %v688, %v684
    %v690 = vlaneseq
    %v691 = vshrl.u32 %v690, 7
    %v692 = vsub.s32 %v389, %v691
    %v693 = vrot.slane %v626, %v692
    %v694 = vlaneseq
    %v695 = vshrl.u32 %v694, 7
    %v696 = vsub.s32 %v394, %v695
    %v697 = vrot.slane %v629, %v696
    %v698 = vsel %vm399, %v697, %v693
    %v699 = vlaneseq
    %v700 = vshrl.u32 %v699, 7
    %v701 = vsub.s32 %v389, %v700
    %v702 = vrot.slane %v632, %v701
    %v703 = vlaneseq
    %v704 = vshrl.u32 %v703, 7
    %v705 = vsub.s32 %v394, %v704
    %v706 = vrot.slane %v635, %v705
    %v707 = vsel %vm399, %v706, %v702
    %v708 = vsel %vm464, %v653, %v644
    %v709 = vsel %vm466, %v662, %v708
    %v710 = vsel %vm468, %v671, %v709
    %v711 = vsel %vm470, %v680, %v710
    %v712 = vsel %vm472, %v689, %v711
    %v713 = vsel %vm474, %v698, %v712
    %v714 = vsel %vm476, %v707, %v713
    %v716 = vsel %vm479, %v714, 0.0
    %717 = vadd.xlane.f32.xlu0 %v716
    %v718 = vpop.xlane.xlu0 %717
    %v719 = vrcp.pop %v718
    %v720 = vmul.f32 %v718, %v719
    %v721 = vsub.f32 2.0, %v720
    %v722 = vmul.f32 %v719, %v721
    %v724 = vlaneseq
    %v725 = vshrl.u32 %v724, 7
    %v726 = vsub.s32 0, %v725
    %v727 = vrot.slane %v722, %v726
    %v728 = vlaneseq
    %v729 = vshrl.u32 %v728, 7
    %v730 = vsub.s32 1, %v729
    %v731 = vrot.slane %v722, %v730
    %v732 = vlaneseq
    %v733 = vshrl.u32 %v732, 7
    %v734 = vsub.s32 2, %v733
    %v735 = vrot.slane %v722, %v734
    %v736 = vlaneseq
    %v737 = vshrl.u32 %v736, 7
    %v738 = vsub.s32 3, %v737
    %v739 = vrot.slane %v722, %v738
    %v740 = vlaneseq
    %v741 = vshrl.u32 %v740, 7
    %v742 = vsub.s32 4, %v741
    %v743 = vrot.slane %v722, %v742
    %v744 = vlaneseq
    %v745 = vshrl.u32 %v744, 7
    %v746 = vsub.s32 5, %v745
    %v747 = vrot.slane %v722, %v746
    %v748 = vlaneseq
    %v749 = vshrl.u32 %v748, 7
    %v750 = vsub.s32 6, %v749
    %v751 = vrot.slane %v722, %v750
    %v752 = vlaneseq
    %v753 = vshrl.u32 %v752, 7
    %v754 = vsub.s32 7, %v753
    %v755 = vrot.slane %v722, %v754
    %v764 = vmul.f32 %v541, %v727
    %v765 = vmul.f32 %v543, %v727
    %v766 = vmul.f32 %v545, %v731
    %v767 = vmul.f32 %v547, %v731
    %v768 = vmul.f32 %v549, %v735
    %v769 = vmul.f32 %v551, %v735
    %v770 = vmul.f32 %v553, %v739
    %v771 = vmul.f32 %v555, %v739
    %v772 = vmul.f32 %v557, %v743
    %v773 = vmul.f32 %v559, %v743
    %v774 = vmul.f32 %v561, %v747
    %v775 = vmul.f32 %v563, %v747
    %v776 = vmul.f32 %v565, %v751
    %v777 = vmul.f32 %v567, %v751
    %v778 = vmul.f32 %v569, %v755
    %v779 = vmul.f32 %v571, %v755
    %v780 = vld [vmem:[#allocation7] sm:$0xff]
    %v781 = vld [vmem:[#allocation7 + $0x8] sm:$0xff]
    %v782 = vld [vmem:[#allocation7 + $0x10] sm:$0xff]
    %v783 = vld [vmem:[#allocation7 + $0x18] sm:$0xff]
    %v784 = vld [vmem:[#allocation7 + $0x20] sm:$0xff]
    %v785 = vld [vmem:[#allocation7 + $0x28] sm:$0xff]
    %v786 = vld [vmem:[#allocation7 + $0x30] sm:$0xff]
    %v787 = vld [vmem:[#allocation7 + $0x38] sm:$0xff]
    %v788 = vld [vmem:[#allocation7 + $0x40] sm:$0xff]
    %v789 = vld [vmem:[#allocation7 + $0x48] sm:$0xff]
    %v790 = vld [vmem:[#allocation7 + $0x50] sm:$0xff]
    %v791 = vld [vmem:[#allocation7 + $0x58] sm:$0xff]
    %v792 = vld [vmem:[#allocation7 + $0x60] sm:$0xff]
    %v793 = vld [vmem:[#allocation7 + $0x68] sm:$0xff]
    %v794 = vld [vmem:[#allocation7 + $0x70] sm:$0xff]
    %v795 = vld [vmem:[#allocation7 + $0x78] sm:$0xff]
    %797 = vset.pattern.permute.xlu0 0
    %798 = vperm.xlu0 %797, %v764
    %v799 = vpop.permute.xlu0 %798
    %802 = vset.pattern.permute.xlu0 0
    %803 = vperm.xlu0 %802, %v765
    %v804 = vpop.permute.xlu0 %803
    %807 = vset.pattern.permute.xlu0 0
    %808 = vperm.xlu0 %807, %v766
    %v809 = vpop.permute.xlu0 %808
    %812 = vset.pattern.permute.xlu0 0
    %813 = vperm.xlu0 %812, %v767
    %v814 = vpop.permute.xlu0 %813
    %817 = vset.pattern.permute.xlu0 0
    %818 = vperm.xlu0 %817, %v768
    %v819 = vpop.permute.xlu0 %818
    %822 = vset.pattern.permute.xlu0 0
    %823 = vperm.xlu0 %822, %v769
    %v824 = vpop.permute.xlu0 %823
    %827 = vset.pattern.permute.xlu0 0
    %828 = vperm.xlu0 %827, %v770
    %v829 = vpop.permute.xlu0 %828
    %832 = vset.pattern.permute.xlu0 0
    %833 = vperm.xlu0 %832, %v771
    %v834 = vpop.permute.xlu0 %833
    %837 = vset.pattern.permute.xlu0 0
    %838 = vperm.xlu0 %837, %v772
    %v839 = vpop.permute.xlu0 %838
    %842 = vset.pattern.permute.xlu0 0
    %843 = vperm.xlu0 %842, %v773
    %v844 = vpop.permute.xlu0 %843
    %847 = vset.pattern.permute.xlu0 0
    %848 = vperm.xlu0 %847, %v774
    %v849 = vpop.permute.xlu0 %848
    %852 = vset.pattern.permute.xlu0 0
    %853 = vperm.xlu0 %852, %v775
    %v854 = vpop.permute.xlu0 %853
    %857 = vset.pattern.permute.xlu0 0
    %858 = vperm.xlu0 %857, %v776
    %v859 = vpop.permute.xlu0 %858
    %862 = vset.pattern.permute.xlu0 0
    %863 = vperm.xlu0 %862, %v777
    %v864 = vpop.permute.xlu0 %863
    %867 = vset.pattern.permute.xlu0 0
    %868 = vperm.xlu0 %867, %v778
    %v869 = vpop.permute.xlu0 %868
    %872 = vset.pattern.permute.xlu0 0
    %873 = vperm.xlu0 %872, %v779
    %v874 = vpop.permute.xlu0 %873
    %v876 = vmul.f32 %v799, %v780
    %v877 = vmul.f32 %v804, %v781
    %v878 = vmul.f32 %v809, %v782
    %v879 = vmul.f32 %v814, %v783
    %v880 = vmul.f32 %v819, %v784
    %v881 = vmul.f32 %v824, %v785
    %v882 = vmul.f32 %v829, %v786
    %v883 = vmul.f32 %v834, %v787
    %v884 = vmul.f32 %v839, %v788
    %v885 = vmul.f32 %v844, %v789
    %v886 = vmul.f32 %v849, %v790
    %v887 = vmul.f32 %v854, %v791
    %v888 = vmul.f32 %v859, %v792
    %v889 = vmul.f32 %v864, %v793
    %v890 = vmul.f32 %v869, %v794
    %v891 = vmul.f32 %v874, %v795
    %v892 = vsel %vm89, %v876, 0.0
    %v893 = vsel %vm89, %v877, 0.0
    %v894 = vadd.f32 %v892, %v893
    %v895 = vrot.slane %v894, 4
    %v896 = vadd.f32 %v894, %v895
    %v897 = vrot.slane %v896, 2
    %v898 = vadd.f32 %v896, %v897
    %v899 = vrot.slane %v898, 1
    %v900 = vadd.f32 %v898, %v899
    %v901 = vsel %vm89, %v878, 0.0
    %v902 = vsel %vm89, %v879, 0.0
    %v903 = vadd.f32 %v901, %v902
    %v904 = vrot.slane %v903, 4
    %v905 = vadd.f32 %v903, %v904
    %v906 = vrot.slane %v905, 2
    %v907 = vadd.f32 %v905, %v906
    %v908 = vrot.slane %v907, 1
    %v909 = vadd.f32 %v907, %v908
    %v910 = vsel %vm89, %v880, 0.0
    %v911 = vsel %vm89, %v881, 0.0
    %v912 = vadd.f32 %v910, %v911
    %v913 = vrot.slane %v912, 4
    %v914 = vadd.f32 %v912, %v913
    %v915 = vrot.slane %v914, 2
    %v916 = vadd.f32 %v914, %v915
    %v917 = vrot.slane %v916, 1
    %v918 = vadd.f32 %v916, %v917
    %v919 = vsel %vm89, %v882, 0.0
    %v920 = vsel %vm89, %v883, 0.0
    %v921 = vadd.f32 %v919, %v920
    %v922 = vrot.slane %v921, 4
    %v923 = vadd.f32 %v921, %v922
    %v924 = vrot.slane %v923, 2
    %v925 = vadd.f32 %v923, %v924
    %v926 = vrot.slane %v925, 1
    %v927 = vadd.f32 %v925, %v926
    %v928 = vsel %vm89, %v884, 0.0
    %v929 = vsel %vm89, %v885, 0.0
    %v930 = vadd.f32 %v928, %v929
    %v931 = vrot.slane %v930, 4
    %v932 = vadd.f32 %v930, %v931
    %v933 = vrot.slane %v932, 2
    %v934 = vadd.f32 %v932, %v933
    %v935 = vrot.slane %v934, 1
    %v936 = vadd.f32 %v934, %v935
    %v937 = vsel %vm89, %v886, 0.0
    %v938 = vsel %vm89, %v887, 0.0
    %v939 = vadd.f32 %v937, %v938
    %v940 = vrot.slane %v939, 4
    %v941 = vadd.f32 %v939, %v940
    %v942 = vrot.slane %v941, 2
    %v943 = vadd.f32 %v941, %v942
    %v944 = vrot.slane %v943, 1
    %v945 = vadd.f32 %v943, %v944
    %v946 = vsel %vm89, %v888, 0.0
    %v947 = vsel %vm89, %v889, 0.0
    %v948 = vadd.f32 %v946, %v947
    %v949 = vrot.slane %v948, 4
    %v950 = vadd.f32 %v948, %v949
    %v951 = vrot.slane %v950, 2
    %v952 = vadd.f32 %v950, %v951
    %v953 = vrot.slane %v952, 1
    %v954 = vadd.f32 %v952, %v953
    %v955 = vsel %vm89, %v890, 0.0
    %v956 = vsel %vm89, %v891, 0.0
    %v957 = vadd.f32 %v955, %v956
    %v958 = vrot.slane %v957, 4
    %v959 = vadd.f32 %v957, %v958
    %v960 = vrot.slane %v959, 2
    %v961 = vadd.f32 %v959, %v960
    %v962 = vrot.slane %v961, 1
    %v963 = vadd.f32 %v961, %v962
    %v972 = vsel %vm464, %v909, %v900
    %v973 = vsel %vm466, %v918, %v972
    %v974 = vsel %vm468, %v927, %v973
    %v975 = vsel %vm470, %v936, %v974
    %v976 = vsel %vm472, %v945, %v975
    %v977 = vsel %vm474, %v954, %v976
    %v978 = vsel %vm476, %v963, %v977
    %980 = vst.msk [vmem:[#allocation10] sm:$0xff] %vm89, %v978
    // Predicated region
    $region42: #{tpu_custom_call.1} parent=1 // pred_check
      _
    $region43: #{tpu_custom_call.1} parent=1 // pred_check_branch
      %982 = sbr.rel (0) target = $region45
    $region44: #{tpu_custom_call.1} parent=1 // pred_region
      %s984 = ssub.s32 128, 128
      %985 = vsyncadd [#allocation4], %s984
      %s987 = sshll.u32 [#allocation10], 4
      %s988 = int_to_ptr.vmem [resolvable:$true] %s987
      %990 = dma.vmem_to_hbm [thread:$0]  %s988, 128, %s6, [#allocation4]
    $region45: #{tpu_custom_call.1} parent=1 // pred_fallthru
      _
    // Predicated region
    $region46: #{tpu_custom_call.1} parent=1 // pred_check
      _
    $region47: #{tpu_custom_call.1} parent=1 // pred_check_branch
      %992 = sbr.rel (0) target = $region49
    $region48: #{tpu_custom_call.1} parent=1 // pred_region
      %993 = dma.done [#allocation4], 128
    $region49: #{tpu_custom_call.1} parent=1 // pred_fallthru
      _
    %994 = vsyncpa [#allocation3], 1
    %995 = vsyncpa [#allocation6], 1
    %996 = vsyncpa [#allocation9], 1
    %997 = vsyncpa [#allocation4], 1

</llo_original>
